<compile_context>
chip_gen: v6e
topology: v6e:2x2x1
jax: 0.10.0
libtpu: 0.0.40
codegen_flags: <defaults>
</compile_context>

<pallas_src>
import functools

import jax
import jax.numpy as jnp
from jax import lax
from jax.experimental import pallas as pl
from jax.experimental.pallas import tpu as pltpu

_LANES = 128
_SUBLANES = 8
_CHUNK_ROWS = 512           # inner accumulation chunk (bounds live VMEM temporaries)
_MAX_TILE_ROWS_F32 = 4096   # 4096*128*4B = 2 MiB per f32 input block
_MAX_TILE_ROWS_BF16 = 8192  # 8192*128*2B = 2 MiB per bf16 input block


def _dice_bce_kernel(x_ref, t_ref, out_ref, *,
                     n_valid, tiles_total, tiles_per_split, needs_mask):
    c = pl.program_id(0)            # core-split index ("parallel" -> megacore on v7x)
    i = pl.program_id(1)            # streaming reduction index ("arbitrary")
    g_tile = c * tiles_per_split + i
    tile_rows = x_ref.shape[0]

    # Zero this split's resident partial-sum block at the start of its sweep.
    @pl.when(i == 0)
    def _():
        out_ref[...] = jnp.zeros_like(out_ref)

    def accumulate(masked):
        def process(r0, rows):
            x = x_ref[pl.ds(r0, rows), :].astype(jnp.float32)
            t = t_ref[pl.ds(r0, rows), :].astype(jnp.float32)

            p = jax.nn.sigmoid(x)
            # Match torch F.binary_cross_entropy: log terms clamped at -100,
            # log(1-p) computed from p directly (correct in saturation).
            a = jnp.maximum(jnp.log(p), -100.0)
            b = jnp.maximum(jnp.log(1.0 - p), -100.0)
            # Un-negated BCE: -(t*a + (1-t)*b) == -(b + t*(a-b)); negate once later.
            bce = b + t * (a - b)
            inter = p * t

            if masked:
                # Exact element validity via (row, lane) decomposition — avoids
                # flat-index int32 overflow on huge inputs. Only the last real
                # tile executes this branch at runtime.
                row = lax.broadcasted_iota(jnp.int32, x.shape, 0)
                lane = lax.broadcasted_iota(jnp.int32, x.shape, 1)
                g_row = g_tile * tile_rows + r0 + row
                full_rows = n_valid // _LANES
                rem_lanes = n_valid % _LANES
                valid = (g_row < full_rows) | ((g_row == full_rows) & (lane < rem_lanes))
                inter = jnp.where(valid, inter, 0.0)
                p = jnp.where(valid, p, 0.0)
                t = jnp.where(valid, t, 0.0)
                bce = jnp.where(valid, bce, 0.0)

            def fold(v):  # (rows, 128) -> (8, 128) partial sums: pure VPU vreg adds
                return v.reshape(rows // _SUBLANES, _SUBLANES, _LANES).sum(axis=0)

            out_ref[0, 0, :, :] += fold(inter)
            out_ref[0, 1, :, :] += fold(p)
            out_ref[0, 2, :, :] += fold(t)
            out_ref[0, 3, :, :] += fold(bce)

        full_chunks = tile_rows // _CHUNK_ROWS
        rem_rows = tile_rows % _CHUNK_ROWS   # multiple of 8 by construction
        if full_chunks > 0:
            def body(ci, carry):
                process(pl.multiple_of(ci * _CHUNK_ROWS, _CHUNK_ROWS), _CHUNK_ROWS)
                return carry
            lax.fori_loop(0, full_chunks, body, 0)
        if rem_rows:
            process(full_chunks * _CHUNK_ROWS, rem_rows)

    if needs_mask:
        is_last_real = g_tile == tiles_total - 1

        @pl.when((g_tile < tiles_total) & jnp.logical_not(is_last_real))
        def _():
            accumulate(masked=False)

        @pl.when(is_last_real)
        def _():
            accumulate(masked=True)
    else:
        # Grid covers the input exactly: no mask code at all on this path.
        accumulate(masked=False)


def _as_streamable(a):
    """Cheapest HBM stream dtype that loses no information."""
    if a.dtype == jnp.float32 or a.dtype == jnp.bfloat16:
        return a
    if a.dtype == jnp.bool_ or jnp.issubdtype(a.dtype, jnp.integer):
        # 0/1 labels are exact in bf16 -> halves (vs f32) the target HBM stream.
        return a.astype(jnp.bfloat16)
    return a.astype(jnp.float32)


def dice_bce_loss(logits, targets, smooth=1.0):
    """Pallas implementation of DiceBCELoss.forward(inputs, targets, smooth)."""
    x = _as_streamable(logits.reshape(-1))
    t = _as_streamable(targets.reshape(-1))
    n = x.shape[0]

    # Align the flat length to one (8 sublane x 128 lane) group so the 2-D view
    # and the vreg fold are always legal. Real copy only on the unaligned path;
    # pad values are irrelevant (last real tile is masked by element index).
    block_elems = _SUBLANES * _LANES
    total = pl.cdiv(n, block_elems) * block_elems
    if total != n:
        # TODO(synk): for very large unaligned inputs this is an extra full pass
        # over both streams; a prefix kernel + plain-JAX tail would avoid it.
        x = jnp.pad(x, (0, total - n))
        t = jnp.pad(t, (0, total - n))
    rows = total // _LANES
    xp = x.reshape(rows, _LANES)
    tp = t.reshape(rows, _LANES)

    max_rows = (_MAX_TILE_ROWS_BF16
                if (xp.dtype == jnp.bfloat16 and tp.dtype == jnp.bfloat16)
                else _MAX_TILE_ROWS_F32)
    tile_rows = min(max_rows, rows)                      # multiple of 8
    tiles_total = pl.cdiv(rows, tile_rows)
    num_splits = 2 if tiles_total >= 2 else 1            # one split per TC on v7x
    tiles_per_split = pl.cdiv(tiles_total, num_splits)
    covered = num_splits * tiles_per_split * tile_rows * _LANES
    needs_mask = covered != n

    kernel = functools.partial(
        _dice_bce_kernel,
        n_valid=int(n),
        tiles_total=int(tiles_total),
        tiles_per_split=int(tiles_per_split),
        needs_mask=bool(needs_mask),
    )

    def in_map(c, i):
        # Clamp phantom trailing steps of an uneven split onto the last real
        # tile; their contribution is skipped in-kernel.
        return (jnp.minimum(c * tiles_per_split + i, tiles_total - 1), 0)

    partials = pl.pallas_call(
        kernel,
        out_shape=jax.ShapeDtypeStruct(
            (num_splits, 4, _SUBLANES, _LANES), jnp.float32),
        grid_spec=pltpu.PrefetchScalarGridSpec(
            num_scalar_prefetch=0,
            grid=(num_splits, tiles_per_split),
            in_specs=[
                pl.BlockSpec((tile_rows, _LANES), in_map),
                pl.BlockSpec((tile_rows, _LANES), in_map),
            ],
            out_specs=pl.BlockSpec((1, 4, _SUBLANES, _LANES),
                                   lambda c, i: (c, 0, 0, 0)),
        ),
        compiler_params=pltpu.CompilerParams(
            dimension_semantics=("parallel", "arbitrary"),
            vmem_limit_bytes=32 * 1024 * 1024,
        ),
    )(xp, tp)

    # O(1) finalize in plain JAX: [intersection, sum(p), sum(t), sum(bce_unneg)].
    sums = jnp.sum(partials, axis=(0, 2, 3))
    intersection, p_sum, t_sum, bce_un = sums[0], sums[1], sums[2], sums[3]
    smooth = jnp.float32(smooth)
    dice_loss = 1.0 - (2.0 * intersection + smooth) / (p_sum + t_sum + smooth)
    bce = -bce_un / jnp.float32(n)
    return bce + dice_loss


def _reference_dice_bce(logits, targets, smooth=1.0):
    p = jax.nn.sigmoid(logits.astype(jnp.float32)).reshape(-1)
    t = targets.astype(jnp.float32).reshape(-1)
    intersection = jnp.sum(p * t)
    dice_loss = 1.0 - (2.0 * intersection + smooth) / (jnp.sum(p) + jnp.sum(t) + smooth)
    log_p = jnp.maximum(jnp.log(p), -100.0)
    log_1mp = jnp.maximum(jnp.log(1.0 - p), -100.0)
    bce = jnp.mean(-(t * log_p + (1.0 - t) * log_1mp))
    return bce + dice_loss


if __name__ == "__main__":
    key = jax.random.PRNGKey(0)
    k1, k2, k3, k4, k5, k6 = jax.random.split(key, 6)

    # 1) Small NCHW case (aligned: no pad, no mask, single tile).
    inputs = jax.random.normal(k1, (2, 4, 16, 16), dtype=jnp.float32)
    targets = jax.random.bernoulli(k2, p=0.3, shape=(2, 4, 16, 16)).astype(jnp.float32)
    loss = jax.block_until_ready(dice_bce_loss(inputs, targets, smooth=1.0))
    ref = _reference_dice_bce(inputs, targets, smooth=1.0)
    assert jnp.allclose(loss, ref, rtol=2e-5, atol=1e-4), (loss, ref)

    # 2) Unaligned flat size + bool targets (pad + masked tile + bf16 target stream).
    inputs2 = jax.random.normal(k3, (2, 3, 7, 11), dtype=jnp.float32)
    targets2 = jax.random.bernoulli(k4, p=0.5, shape=(2, 3, 7, 11))
    loss2 = jax.block_until_ready(dice_bce_loss(inputs2, targets2, smooth=1.0))
    ref2 = _reference_dice_bce(inputs2, targets2, smooth=1.0)
    assert jnp.allclose(loss2, ref2, rtol=2e-5, atol=1e-4), (loss2, ref2)

    # 3) Multi-tile case (two-way core split, partial last tile).
    inputs3 = jax.random.normal(k5, (1, 2, 520, 512), dtype=jnp.float32)
    targets3 = jax.random.bernoulli(k6, p=0.4, shape=(1, 2, 520, 512)).astype(jnp.float32)
    loss3 = jax.block_until_ready(dice_bce_loss(inputs3, targets3, smooth=1.0))
    ref3 = _reference_dice_bce(inputs3, targets3, smooth=1.0)
    assert jnp.allclose(loss3, ref3, rtol=2e-5, atol=1e-4), (loss3, ref3)

    print("KERNEL_OK")
</pallas_src>

<mosaic_0001>
module attributes {stable_mosaic.version = 11 : i64} {
  func.func @_dice_bce_kernel(%arg0: i32, %arg1: i32, %arg2: memref<16x128xf32, #tpu.memory_space<vmem>>, %arg3: memref<16x128xf32, #tpu.memory_space<vmem>>, %arg4: memref<1x4x8x128xf32, #tpu.memory_space<vmem>>) attributes {dimension_semantics = [#tpu.dimension_semantics<parallel>, #tpu.dimension_semantics<arbitrary>], iteration_bounds = array<i64: 1, 1>, scalar_prefetch = 0 : i64, scratch_operands = 0 : i64, tpu.core_type = #tpu.core_type<tc>, window_params = [{transform_indices = @transform_0, window_bounds = array<i64: 16, 128>}, {transform_indices = @transform_1, window_bounds = array<i64: 16, 128>}, {transform_indices = @transform_2, window_bounds = array<i64: 1, 4, 8, 128>}]} {
    %c0_i32 = arith.constant 0 : i32
    %0 = arith.cmpi eq, %arg1, %c0_i32 : i32
    %1 = arith.extui %0 : i1 to i32
    %c0_i32_0 = arith.constant 0 : i32
    %2 = arith.cmpi ne, %1, %c0_i32_0 : i32
    scf.if %2 {
      %cst_40 = arith.constant 0.000000e+00 : f32
      %54 = vector.broadcast %cst_40 : f32 to vector<1x4x8x128xf32>
      %c0_41 = arith.constant 0 : index
      %c0_42 = arith.constant 0 : index
      %c0_43 = arith.constant 0 : index
      %c0_44 = arith.constant 0 : index
      %55 = vector.load %arg4[%c0_41, %c0_42, %c0_43, %c0_44] : memref<1x4x8x128xf32, #tpu.memory_space<vmem>>, vector<1x4x8x128xf32>
      tpu.vector_store %arg4[%c0_41, %c0_42, %c0_43, %c0_44], %54 {strides = array<i32>} : memref<1x4x8x128xf32, #tpu.memory_space<vmem>>, vector<1x4x8x128xf32>,
    } else {
    }
    %c0 = arith.constant 0 : index
    %c0_1 = arith.constant 0 : index
    %3 = vector.load %arg2[%c0, %c0_1] : memref<16x128xf32, #tpu.memory_space<vmem>>, vector<16x128xf32>
    %c0_2 = arith.constant 0 : index
    %c0_3 = arith.constant 0 : index
    %4 = vector.load %arg3[%c0_2, %c0_3] : memref<16x128xf32, #tpu.memory_space<vmem>>, vector<16x128xf32>
    %5 = arith.negf %3 : vector<16x128xf32>
    %6 = math.exp %5 : vector<16x128xf32>
    %cst = arith.constant 1.000000e+00 : f32
    %7 = vector.broadcast %cst : f32 to vector<16x128xf32>
    %8 = arith.addf %7, %6 : vector<16x128xf32>
    %9 = arith.divf %7, %8 : vector<16x128xf32>
    %10 = math.log %9 : vector<16x128xf32>
    %cst_4 = arith.constant -1.000000e+02 : f32
    %11 = vector.broadcast %cst_4 : f32 to vector<16x128xf32>
    %12 = arith.maximumf %10, %11 : vector<16x128xf32>
    %cst_5 = arith.constant 1.000000e+00 : f32
    %13 = vector.broadcast %cst_5 : f32 to vector<16x128xf32>
    %14 = arith.subf %13, %9 : vector<16x128xf32>
    %15 = math.log %14 : vector<16x128xf32>
    %cst_6 = arith.constant -1.000000e+02 : f32
    %16 = vector.broadcast %cst_6 : f32 to vector<16x128xf32>
    %17 = arith.maximumf %15, %16 : vector<16x128xf32>
    %18 = arith.subf %12, %17 : vector<16x128xf32>
    %19 = arith.mulf %4, %18 : vector<16x128xf32>
    %20 = arith.addf %17, %19 : vector<16x128xf32>
    %21 = arith.mulf %9, %4 : vector<16x128xf32>
    %c0_7 = arith.constant 0 : index
    %c0_8 = arith.constant 0 : index
    %c0_9 = arith.constant 0 : index
    %c0_10 = arith.constant 0 : index
    %22 = vector.load %arg4[%c0_7, %c0_8, %c0_9, %c0_10] : memref<1x4x8x128xf32, #tpu.memory_space<vmem>>, vector<1x1x8x128xf32>
    %23 = vector.shape_cast %22 : vector<1x1x8x128xf32> to vector<8x128xf32>
    %24 = vector.shape_cast %21 : vector<16x128xf32> to vector<2x8x128xf32>
    %cst_11 = arith.constant dense<0.000000e+00> : vector<8x128xf32>
    %25 = vector.multi_reduction <add>, %24, %cst_11 [0] : vector<2x8x128xf32> to vector<8x128xf32>
    %26 = arith.addf %23, %25 : vector<8x128xf32>
    %c0_12 = arith.constant 0 : index
    %c0_13 = arith.constant 0 : index
    %c0_14 = arith.constant 0 : index
    %c0_15 = arith.constant 0 : index
    %27 = vector.load %arg4[%c0_12, %c0_13, %c0_14, %c0_15] : memref<1x4x8x128xf32, #tpu.memory_space<vmem>>, vector<1x1x8x128xf32>
    %28 = vector.shape_cast %27 : vector<1x1x8x128xf32> to vector<8x128xf32>
    %29 = vector.shape_cast %26 : vector<8x128xf32> to vector<1x1x8x128xf32>
    tpu.vector_store %arg4[%c0_12, %c0_13, %c0_14, %c0_15], %29 {strides = array<i32>} : memref<1x4x8x128xf32, #tpu.memory_space<vmem>>, vector<1x1x8x128xf32>,
    %c0_16 = arith.constant 0 : index
    %c1 = arith.constant 1 : index
    %c0_17 = arith.constant 0 : index
    %c0_18 = arith.constant 0 : index
    %30 = vector.load %arg4[%c0_16, %c1, %c0_17, %c0_18] : memref<1x4x8x128xf32, #tpu.memory_space<vmem>>, vector<1x1x8x128xf32>
    %31 = vector.shape_cast %30 : vector<1x1x8x128xf32> to vector<8x128xf32>
    %32 = vector.shape_cast %9 : vector<16x128xf32> to vector<2x8x128xf32>
    %cst_19 = arith.constant dense<0.000000e+00> : vector<8x128xf32>
    %33 = vector.multi_reduction <add>, %32, %cst_19 [0] : vector<2x8x128xf32> to vector<8x128xf32>
    %34 = arith.addf %31, %33 : vector<8x128xf32>
    %c0_20 = arith.constant 0 : index
    %c1_21 = arith.constant 1 : index
    %c0_22 = arith.constant 0 : index
    %c0_23 = arith.constant 0 : index
    %35 = vector.load %arg4[%c0_20, %c1_21, %c0_22, %c0_23] : memref<1x4x8x128xf32, #tpu.memory_space<vmem>>, vector<1x1x8x128xf32>
    %36 = vector.shape_cast %35 : vector<1x1x8x128xf32> to vector<8x128xf32>
    %37 = vector.shape_cast %34 : vector<8x128xf32> to vector<1x1x8x128xf32>
    tpu.vector_store %arg4[%c0_20, %c1_21, %c0_22, %c0_23], %37 {strides = array<i32>} : memref<1x4x8x128xf32, #tpu.memory_space<vmem>>, vector<1x1x8x128xf32>,
    %c0_24 = arith.constant 0 : index
    %c2 = arith.constant 2 : index
    %c0_25 = arith.constant 0 : index
    %c0_26 = arith.constant 0 : index
    %38 = vector.load %arg4[%c0_24, %c2, %c0_25, %c0_26] : memref<1x4x8x128xf32, #tpu.memory_space<vmem>>, vector<1x1x8x128xf32>
    %39 = vector.shape_cast %38 : vector<1x1x8x128xf32> to vector<8x128xf32>
    %40 = vector.shape_cast %4 : vector<16x128xf32> to vector<2x8x128xf32>
    %cst_27 = arith.constant dense<0.000000e+00> : vector<8x128xf32>
    %41 = vector.multi_reduction <add>, %40, %cst_27 [0] : vector<2x8x128xf32> to vector<8x128xf32>
    %42 = arith.addf %39, %41 : vector<8x128xf32>
    %c0_28 = arith.constant 0 : index
    %c2_29 = arith.constant 2 : index
    %c0_30 = arith.constant 0 : index
    %c0_31 = arith.constant 0 : index
    %43 = vector.load %arg4[%c0_28, %c2_29, %c0_30, %c0_31] : memref<1x4x8x128xf32, #tpu.memory_space<vmem>>, vector<1x1x8x128xf32>
    %44 = vector.shape_cast %43 : vector<1x1x8x128xf32> to vector<8x128xf32>
    %45 = vector.shape_cast %42 : vector<8x128xf32> to vector<1x1x8x128xf32>
    tpu.vector_store %arg4[%c0_28, %c2_29, %c0_30, %c0_31], %45 {strides = array<i32>} : memref<1x4x8x128xf32, #tpu.memory_space<vmem>>, vector<1x1x8x128xf32>,
    %c0_32 = arith.constant 0 : index
    %c3 = arith.constant 3 : index
    %c0_33 = arith.constant 0 : index
    %c0_34 = arith.constant 0 : index
    %46 = vector.load %arg4[%c0_32, %c3, %c0_33, %c0_34] : memref<1x4x8x128xf32, #tpu.memory_space<vmem>>, vector<1x1x8x128xf32>
    %47 = vector.shape_cast %46 : vector<1x1x8x128xf32> to vector<8x128xf32>
    %48 = vector.shape_cast %20 : vector<16x128xf32> to vector<2x8x128xf32>
    %cst_35 = arith.constant dense<0.000000e+00> : vector<8x128xf32>
    %49 = vector.multi_reduction <add>, %48, %cst_35 [0] : vector<2x8x128xf32> to vector<8x128xf32>
    %50 = arith.addf %47, %49 : vector<8x128xf32>
    %c0_36 = arith.constant 0 : index
    %c3_37 = arith.constant 3 : index
    %c0_38 = arith.constant 0 : index
    %c0_39 = arith.constant 0 : index
    %51 = vector.load %arg4[%c0_36, %c3_37, %c0_38, %c0_39] : memref<1x4x8x128xf32, #tpu.memory_space<vmem>>, vector<1x1x8x128xf32>
    %52 = vector.shape_cast %51 : vector<1x1x8x128xf32> to vector<8x128xf32>
    %53 = vector.shape_cast %50 : vector<8x128xf32> to vector<1x1x8x128xf32>
    tpu.vector_store %arg4[%c0_36, %c3_37, %c0_38, %c0_39], %53 {strides = array<i32>} : memref<1x4x8x128xf32, #tpu.memory_space<vmem>>, vector<1x1x8x128xf32>,
    return
  }
  func.func @transform_0(%arg0: i32, %arg1: i32) -> (i32, i32) {
    %c1_i32 = arith.constant 1 : i32
    %0 = arith.muli %arg0, %c1_i32 : i32
    %1 = arith.addi %0, %arg1 : i32
    %c0_i32 = arith.constant 0 : i32
    %2 = arith.minsi %1, %c0_i32 : i32
    %c0_i32_0 = arith.constant 0 : i32
    %c0_i32_1 = arith.constant 0 : i32
    return %2, %c0_i32_0 : i32, i32
  }
  func.func @transform_1(%arg0: i32, %arg1: i32) -> (i32, i32) {
    %c1_i32 = arith.constant 1 : i32
    %0 = arith.muli %arg0, %c1_i32 : i32
    %1 = arith.addi %0, %arg1 : i32
    %c0_i32 = arith.constant 0 : i32
    %2 = arith.minsi %1, %c0_i32 : i32
    %c0_i32_0 = arith.constant 0 : i32
    %c0_i32_1 = arith.constant 0 : i32
    return %2, %c0_i32_0 : i32, i32
  }
  func.func @transform_2(%arg0: i32, %arg1: i32) -> (i32, i32, i32, i32) {
    %c0_i32 = arith.constant 0 : i32
    %c0_i32_0 = arith.constant 0 : i32
    %c0_i32_1 = arith.constant 0 : i32
    %c0_i32_2 = arith.constant 0 : i32
    return %arg0, %c0_i32, %c0_i32_0, %c0_i32_1 : i32, i32, i32, i32
  }
}

</mosaic_0001>

<llo_original>
// kernel: tpu_custom_call.1
$region0: #{tpu_custom_call.1}
  #allocation0 [shape = 'u32[]', space=smem, size = 0x4, offset = 0x4, fixed_abs, tag = 'smem constant byte address 0x4 - core index']
  #allocation1 [shape = 'u32[144,128]{1,0:T(1,128)}', space=vmem, size = 0x12000, scoped, tag = 'internal scratch']
  %s0 = inlined_call_operand.hbm [shape: f32[16,128], index: 0, kind: input, shape index: {}]
  %s1 = inlined_call_operand.hbm [shape: f32[16,128], index: 1, kind: input, shape index: {}]
  %s2 = inlined_call_operand.hbm [shape: f32[1,4,8,128], index: 2, kind: output, shape index: {}]
  %s3 = sld [smem:[#allocation0]]
  $region30: #{tpu_custom_call.1} parent=0
    _
  %s5 = ssub.s32 1, %s3
  %s6 = scalar_select 0, %s5, %s3
  $region1: #{tpu_custom_call.1} parent=0
    #allocation2 [shape = 'u8[8192]{0}', space=vmem, size = 0x2000, scoped, tag = 'input window, operand 0, single buffered']
    #allocation3 [shape = 's32[1]{0}', space=sflag, size = 0x4, scoped, tag = 'scoped memory for tpu_custom_call.1']
    #allocation4 [shape = 's32[1]{0}', space=sflag, size = 0x4, scoped, tag = 'scoped memory for tpu_custom_call.1']
    #allocation5 [shape = 'u8[8192]{0}', space=vmem, size = 0x2000, scoped, tag = 'input window, operand 1, single buffered']
    #allocation6 [shape = 's32[1]{0}', space=sflag, size = 0x4, scoped, tag = 'scoped memory for tpu_custom_call.1']
    #allocation7 [shape = 'u8[16384]{0}', space=vmem, size = 0x4000, scoped, tag = 'output window, operand 0, single buffered']
    %7 = vsyncpa [#allocation3], 0
    %8 = vsyncpa [#allocation6], 0
    %9 = vsyncpa [#allocation4], 0
    // Predicated region
    $region2: #{tpu_custom_call.1} parent=1 // pred_check
      _
    $region3: #{tpu_custom_call.1} parent=1 // pred_check_branch
      %11 = sbr.rel (0) target = $region5
    $region4: #{tpu_custom_call.1} parent=1 // pred_region
      %s12 = sadd.s32 0, 0
      %p13 = scmp.lt.s32.totalorder %s12, 0
      %s14 = scalar_select %p13, %s12, 0
      %s15 = smul.u32 2, %s14
      %s17 = ssub.s32 256, 256
      %18 = vsyncadd [#allocation3], %s17
      %s19 = smul.addr %s15, 128
      %s20 = scalar_lea.hbm %s0, %s19
      %s21 = sshll.u32 [#allocation2], 4
      %s22 = int_to_ptr.vmem [resolvable:$true] %s21
      %27 = dma.hbm_to_vmem [thread:$0]  %s20, 256, %s22, [#allocation3], 128, 128, 8
    $region5: #{tpu_custom_call.1} parent=1 // pred_fallthru
      _
    // Predicated region
    $region6: #{tpu_custom_call.1} parent=1 // pred_check
      _
    $region7: #{tpu_custom_call.1} parent=1 // pred_check_branch
      %29 = sbr.rel (0) target = $region9
    $region8: #{tpu_custom_call.1} parent=1 // pred_region
      %s30 = sadd.s32 0, 0
      %p31 = scmp.lt.s32.totalorder %s30, 0
      %s32 = scalar_select %p31, %s30, 0
      %s33 = smul.u32 2, %s32
      %s35 = ssub.s32 256, 256
      %36 = vsyncadd [#allocation6], %s35
      %s37 = smul.addr %s33, 128
      %s38 = scalar_lea.hbm %s1, %s37
      %s39 = sshll.u32 [#allocation5], 4
      %s40 = int_to_ptr.vmem [resolvable:$true] %s39
      %45 = dma.hbm_to_vmem [thread:$0]  %s38, 256, %s40, [#allocation6], 128, 128, 8
    $region9: #{tpu_custom_call.1} parent=1 // pred_fallthru
      _
    // Predicated region
    $region10: #{tpu_custom_call.1} parent=1 // pred_check
      _
    $region11: #{tpu_custom_call.1} parent=1 // pred_check_branch
      %47 = sbr.rel (0) target = $region13
    $region12: #{tpu_custom_call.1} parent=1 // pred_region
      %48 = dma.done [#allocation3], 256
    $region13: #{tpu_custom_call.1} parent=1 // pred_fallthru
      _
    // Predicated region
    $region14: #{tpu_custom_call.1} parent=1 // pred_check
      _
    $region15: #{tpu_custom_call.1} parent=1 // pred_check_branch
      %50 = sbr.rel (0) target = $region17
    $region16: #{tpu_custom_call.1} parent=1 // pred_region
      %51 = dma.done [#allocation6], 256
    $region17: #{tpu_custom_call.1} parent=1 // pred_fallthru
      _
    %s52 = sadd.s32 0, 0
    %p53 = scmp.lt.s32.totalorder %s52, 0
    %s54 = scalar_select %p53, %s52, 0
    %s55 = smul.u32 2, %s54
    %s56 = sadd.s32 0, 0
    %p57 = scmp.lt.s32.totalorder %s56, 0
    %s58 = scalar_select %p57, %s56, 0
    %s59 = smul.u32 2, %s58
    %p60 = scmp.eq.s32.totalorder 0, 0
    // Predicated region
    $region18: #{tpu_custom_call.1} parent=1 // pred_check
      %p61 = pneg %p60
    $region19: #{tpu_custom_call.1} parent=1 // pred_check_branch
      %63 = sbr.rel (%p61) target = $region21
    $region20: #{tpu_custom_call.1} parent=1 // pred_region
      %64 = vst [vmem:[#allocation7] sm:$0xff] 0.0
      %65 = vst [vmem:[#allocation7 + $0x8] sm:$0xff] 0.0
      %66 = vst [vmem:[#allocation7 + $0x10] sm:$0xff] 0.0
      %67 = vst [vmem:[#allocation7 + $0x18] sm:$0xff] 0.0
    $region21: #{tpu_custom_call.1} parent=1 // pred_fallthru
      _
    %v68 = vld [vmem:[#allocation2] sm:$0xff]
    %v69 = vld [vmem:[#allocation2 + $0x8] sm:$0xff]
    %v70 = vld [vmem:[#allocation5] sm:$0xff]
    %v71 = vld [vmem:[#allocation5 + $0x8] sm:$0xff]
    %v72 = vxor.u32 %v68, 2147483648
    %v73 = vxor.u32 %v69, 2147483648
    %v74 = vmul.f32 %v72, 1.442695
    %v75 = vpow.pop %v74
    %v76 = vmul.f32 %v73, 1.442695
    %v77 = vpow.pop %v76
    %v78 = vadd.f32 %v75, 1.0
    %v79 = vadd.f32 %v77, 1.0
    %v80 = vrcp.pop %v78
    %v81 = vmul.f32 1.0, %v80
    %v82 = vrcp.pop %v79
    %v83 = vmul.f32 1.0, %v82
    %v84 = vlog2.pop %v81
    %v85 = vmul.f32 %v84, 0.6931472
    %v86 = vlog2.pop %v83
    %v87 = vmul.f32 %v86, 0.6931472
    %v88 = vmax.f32 %v85, -100.0
    %v89 = vmax.f32 %v87, -100.0
    %v90 = vsub.f32 1.0, %v81
    %v91 = vsub.f32 1.0, %v83
    %v92 = vlog2.pop %v90
    %v93 = vmul.f32 %v92, 0.6931472
    %v94 = vlog2.pop %v91
    %v95 = vmul.f32 %v94, 0.6931472
    %v96 = vmax.f32 %v93, -100.0
    %v97 = vmax.f32 %v95, -100.0
    %v98 = vsub.f32 %v88, %v96
    %v99 = vsub.f32 %v89, %v97
    %v100 = vmul.f32 %v70, %v98
    %v101 = vmul.f32 %v71, %v99
    %v102 = vadd.f32 %v96, %v100
    %v103 = vadd.f32 %v97, %v101
    %v104 = vmul.f32 %v81, %v70
    %v105 = vmul.f32 %v83, %v71
    %v106 = vld [vmem:[#allocation7] sm:$0xff]
    %v107 = vadd.f32 %v104, %v105
    %v108 = vadd.f32 %v106, %v107
    %109 = vst [vmem:[#allocation7] sm:$0xff] %v108
    %s110 = scalar_lea.vmem [#allocation7], 8
    %v111 = vld [vmem:[%s110] sm:$0xff]
    %v112 = vadd.f32 %v81, %v83
    %v113 = vadd.f32 %v111, %v112
    %114 = vst [vmem:[%s110] sm:$0xff] %v113
    %s115 = scalar_lea.vmem [#allocation7], 16
    %v116 = vld [vmem:[%s115] sm:$0xff]
    %v117 = vadd.f32 %v70, %v71
    %v118 = vadd.f32 %v116, %v117
    %119 = vst [vmem:[%s115] sm:$0xff] %v118
    %s120 = scalar_lea.vmem [#allocation7], 24
    %v121 = vld [vmem:[%s120] sm:$0xff]
    %v122 = vadd.f32 %v102, %v103
    %v123 = vadd.f32 %v121, %v122
    %124 = vst [vmem:[%s120] sm:$0xff] %v123
    // Predicated region
    $region22: #{tpu_custom_call.1} parent=1 // pred_check
      _
    $region23: #{tpu_custom_call.1} parent=1 // pred_check_branch
      %126 = sbr.rel (0) target = $region25
    $region24: #{tpu_custom_call.1} parent=1 // pred_region
      %s128 = ssub.s32 512, 512
      %129 = vsyncadd [#allocation4], %s128
      %s130 = sshll.u32 [#allocation7], 4
      %s131 = int_to_ptr.vmem [resolvable:$true] %s130
      %136 = dma.vmem_to_hbm [thread:$0]  %s131, 512, %s2, [#allocation4], 128, 128, 8
    $region25: #{tpu_custom_call.1} parent=1 // pred_fallthru
      _
    // Predicated region
    $region26: #{tpu_custom_call.1} parent=1 // pred_check
      _
    $region27: #{tpu_custom_call.1} parent=1 // pred_check_branch
      %138 = sbr.rel (0) target = $region29
    $region28: #{tpu_custom_call.1} parent=1 // pred_region
      %139 = dma.done [#allocation4], 512
    $region29: #{tpu_custom_call.1} parent=1 // pred_fallthru
      _
    %140 = vsyncpa [#allocation3], 1
    %141 = vsyncpa [#allocation6], 1
    %142 = vsyncpa [#allocation4], 1

</llo_original>
